<compile_context>
chip_gen: v7x
topology: tpu7x:2x2x1
jax: 0.10.0
libtpu: 0.0.40
codegen_flags: <defaults>
</compile_context>

<pallas_src>
import functools

import jax
import jax.numpy as jnp
from jax.experimental import pallas as pl
from jax.experimental.pallas import tpu as pltpu

# ----------------------------- problem sizes --------------------------------
B = 200        # batch (padded to a multiple of 128 inside the wrapper)
NZ = 16        # noise dim
OBS = 16       # obs_data conditioning dim
H = 32         # generator hidden width
T = 64         # trajectory length (time steps)
LANE = 128     # lane width / per-tile batch on multi-TC chips

# STL constants hard-coded in the module's __init__.
X_THR = 15.0          # Atom(var 0, 15, lte=True)   ->  15 - x
Y_THR_HI = 35.0       # Atom(var 1, 35, lte=True)   ->  35 - y
Y_THR_LO = 27.0       # Atom(var 1, 27, lte=False)  ->  y - 27
TIME_BOUND = 30       # Eventually(..., time_bound=30)
# TODO(synk): if the project's stl.Eventually(unbound=True) ignores time_bound,
# change T_START to T - 1 (kernel and reference must change together).
T_START = min(TIME_BOUND, T - 1)        # first timestep that can affect rho
VALID_T = T - T_START                   # 34 relevant timesteps per channel
TR = ((VALID_T + 7) // 8) * 8           # 40: per-channel slab rows (sublane aligned)
PAD_BIAS = -20.0                        # tanh(-20) == -1 -> pad rows never win a max


def _single_tc_chip():
    """True for single-TensorCore chips (v5e / v6e): run the batch in one step."""
    try:
        kind = jax.devices()[0].device_kind.lower()
    except Exception:
        return False
    return any(tag in kind for tag in ("v5e", "v5 lite", "v6e", "v6 lite"))


# ------------------------------- kernel -------------------------------------
def _make_kernel(x_scale, x_off, y_scale, y_off_lo, y_off_hi):
    """Fused generator + STL-robustness kernel.  Rescale + thresholds folded
    into Python-float constants (no SMEM operands); scales are > 0 so
    min_t(off - scale*s) == off - scale*max_t(s), etc."""

    def kernel(noise_ref, w1t_ref, b1_ref, w2sl_ref, b2sl_ref, out_ref):
        # layer 1: (H, NZ) x (NZ, TB) -> (H, TB); bf16 MXU, f32 accumulate.
        h = jnp.dot(w1t_ref[...], noise_ref[...],
                    preferred_element_type=jnp.float32)
        h = h + b1_ref[...]                             # (H,1) lane-broadcast, f32
        h = jnp.maximum(h, 0.2 * h)                     # LeakyReLU(0.2), VPU

        # layer 2 on the sliced (t >= T_START) rows only:
        # (2*TR, H) x (H, TB) -> (2*TR, TB); bf16 MXU, f32 accumulate.
        o = jnp.dot(w2sl_ref[...], h.astype(w2sl_ref.dtype),
                    preferred_element_type=jnp.float32)
        s = jnp.tanh(o + b2sl_ref[...])                 # (2*TR, TB), EUP, f32

        sx = s[:TR, :]                                  # x-channel slab (aligned view)
        sy = s[TR:, :]                                  # y-channel slab (aligned view)

        # suffix reductions first (XLU), atoms on (1, TB) vectors after (VPU).
        mx = jnp.max(sx, axis=0, keepdims=True)         # pad rows == -1 -> harmless
        my_hi = jnp.max(sy, axis=0, keepdims=True)      # pad rows == -1 -> harmless
        t_idx = jax.lax.broadcasted_iota(jnp.int32, sy.shape, 0)
        my_lo = jnp.min(jnp.where(t_idx < VALID_T, sy, jnp.inf),
                        axis=0, keepdims=True)          # mask only the pad rows

        # atoms with the rescale (sig + 1) * MAXES / 2 folded in:
        #   min_t(15 - x)  = (15 - xm/2) - (xm/2) * max_t(sx)
        #   min_t(y - 27)  = (ym/2 - 27) + (ym/2) * min_t(sy)
        #   min_t(35 - y)  = (35 - ym/2) - (ym/2) * max_t(sy)
        a_x = x_off - x_scale * mx
        a_ylo = y_off_lo + y_scale * my_lo
        a_yhi = y_off_hi - y_scale * my_hi
        out_ref[...] = jnp.minimum(a_x, jnp.minimum(a_ylo, a_yhi))   # (1, TB)

    return kernel


# ------------------------------- wrapper -------------------------------------
@functools.partial(jax.jit, static_argnames=("maxes",))
def cond_gen_quant_stl(noise, obs_data, w1, b1, w2, b2, maxes):
    """Robustness of shape (B,).  `maxes` = (x_max, y_max) static floats."""
    x_max, y_max = maxes
    bn = noise.shape[0]
    b_pad = pl.cdiv(bn, LANE) * LANE

    # Streamed operand: lane-dense transposed noise (NZ, b_pad) in bf16.
    noise_t = jnp.transpose(noise).astype(jnp.bfloat16)
    if b_pad != bn:
        noise_t = jnp.pad(noise_t, ((0, 0), (0, b_pad - bn)))

    # Single-TC chips: one grid step; multi-TC chips: 128-lane parallel tiles.
    tb = b_pad if _single_tc_chip() else LANE
    num_tiles = b_pad // tb

    # Fold the (batch-invariant) obs conditioning into the hidden bias.
    # TODO(synk): the real `generator` submodule is opaque in the PyTorch spec;
    # a deterministic 2-layer MLP (LeakyReLU hidden, tanh output, NCW (B,2,T)
    # channel-major output) stands in -- export real weights into w1/b1/w2/b2.
    w1n, w1o = w1[:NZ], w1[NZ:]
    b1_eff = (b1 + obs_data @ w1o).reshape(H, 1).astype(jnp.float32)
    w1nt = jnp.transpose(w1n).astype(jnp.bfloat16)          # (H, NZ)

    # Layer-2 rows for t >= T_START only, per channel, padded to TR sublanes.
    w2t = jnp.transpose(w2)                                 # (2T, H)
    pad = TR - VALID_T
    w2x = jnp.pad(w2t[T_START:T], ((0, pad), (0, 0)))
    w2y = jnp.pad(w2t[T + T_START:2 * T], ((0, pad), (0, 0)))
    w2sl = jnp.concatenate([w2x, w2y], axis=0).astype(jnp.bfloat16)    # (2*TR, H)
    b2x = jnp.pad(b2[T_START:T], (0, pad), constant_values=PAD_BIAS)
    b2y = jnp.pad(b2[T + T_START:2 * T], (0, pad), constant_values=PAD_BIAS)
    b2sl = jnp.concatenate([b2x, b2y]).reshape(2 * TR, 1).astype(jnp.float32)

    x_scale = 0.5 * x_max
    y_scale = 0.5 * y_max
    kernel = _make_kernel(
        x_scale=x_scale, x_off=X_THR - x_scale,
        y_scale=y_scale, y_off_lo=y_scale - Y_THR_LO, y_off_hi=Y_THR_HI - y_scale)

    grid_spec = pltpu.PrefetchScalarGridSpec(
        num_scalar_prefetch=0,
        grid=(num_tiles,),
        in_specs=[
            pl.BlockSpec((NZ, tb), lambda i: (0, i)),       # streamed, lane-dense
            pl.BlockSpec((H, NZ), lambda i: (0, 0)),        # weights: VMEM-resident
            pl.BlockSpec((H, 1), lambda i: (0, 0)),
            pl.BlockSpec((2 * TR, H), lambda i: (0, 0)),
            pl.BlockSpec((2 * TR, 1), lambda i: (0, 0)),
        ],
        out_specs=pl.BlockSpec((1, tb), lambda i: (0, i)),  # lane-dense robustness
    )

    flops = 2 * b_pad * (NZ * H + H * 2 * TR)
    bytes_accessed = (b_pad * NZ * 2 + H * NZ * 2 + 2 * TR * H * 2
                      + (H + 2 * TR) * 4 + b_pad * 4)
    out = pl.pallas_call(
        kernel,
        grid_spec=grid_spec,
        out_shape=jax.ShapeDtypeStruct((1, b_pad), jnp.float32),
        compiler_params=pltpu.CompilerParams(
            dimension_semantics=("parallel",)),
        cost_estimate=pl.CostEstimate(flops=flops,
                                      transcendentals=b_pad * 2 * TR,
                                      bytes_accessed=bytes_accessed),
    )(noise_t, w1nt, b1_eff, w2sl, b2sl)
    return out[0, :bn]     # drop padded batch rows


# --------------------------- pure-JAX reference -------------------------------
def _reference(noise, obs_data, w1, b1, w2, b2, maxes):
    """Full (non-simplified) STL semantics; mirrors the kernel's bf16 MXU inputs."""
    x_max, y_max = maxes
    q = lambda a: a.astype(jnp.bfloat16).astype(jnp.float32)
    w1n, w1o = w1[:NZ], w1[NZ:]
    b1_eff = b1 + obs_data @ w1o
    h = q(noise) @ q(w1n) + b1_eff
    h = jnp.where(h > 0.0, h, 0.2 * h)
    sig = jnp.tanh(q(h) @ q(w2) + b2)                       # (B, 2T)
    sig = sig.reshape(noise.shape[0], 2, T)                 # (B, 2, T) NCW
    x = (sig[:, 0, :] + 1.0) * (0.5 * x_max)                # rescale uses MAXES only
    y = (sig[:, 1, :] + 1.0) * (0.5 * y_max)
    r = jnp.minimum(X_THR - x, jnp.minimum(y - Y_THR_LO, Y_THR_HI - y))
    g = jax.lax.cummin(r, axis=1, reverse=True)             # Globally(unbound) trace
    rho = jnp.max(g[:, :T_START + 1], axis=1)               # Eventually(time_bound)
    return rho


# ---------------------------------- main --------------------------------------
if __name__ == "__main__":
    key = jax.random.PRNGKey(0)
    k_noise, k_obs, k_w1, k_b1, k_w2, k_b2 = jax.random.split(key, 6)

    # Deterministic synthetic generator parameters & inputs (no checkpoint).
    noise = jax.random.normal(k_noise, (B, NZ), dtype=jnp.float32)
    obs_data = jax.random.normal(k_obs, (OBS,), dtype=jnp.float32)
    w1 = 0.3 * jax.random.normal(k_w1, (NZ + OBS, H), dtype=jnp.float32)
    b1 = 0.1 * jax.random.normal(k_b1, (H,), dtype=jnp.float32)
    w2 = 0.3 * jax.random.normal(k_w2, (H, 2 * T), dtype=jnp.float32)
    b2 = 0.1 * jax.random.normal(k_b2, (2 * T,), dtype=jnp.float32)

    # Constructor args: MAXES per (x, y) channel; MINS stored but unused by forward.
    MAXES = (30.0, 40.0)

    rho = cond_gen_quant_stl(noise, obs_data, w1, b1, w2, b2, maxes=MAXES)
    rho = jax.block_until_ready(rho)

    ref = _reference(noise, obs_data, w1, b1, w2, b2, MAXES)
    assert rho.shape == (B,)
    assert bool(jnp.all(jnp.isfinite(rho)))
    assert bool(jnp.allclose(rho, ref, rtol=1e-2, atol=5e-2)), (rho, ref)

    print("KERNEL_OK")
</pallas_src>

<mosaic_0001>
module attributes {stable_mosaic.version = 11 : i64} {
  func.func @kernel(%arg0: i32, %arg1: memref<16x128xbf16, #tpu.memory_space<vmem>>, %arg2: memref<32x16xbf16, #tpu.memory_space<vmem>>, %arg3: memref<32x1xf32, #tpu.memory_space<vmem>>, %arg4: memref<80x32xbf16, #tpu.memory_space<vmem>>, %arg5: memref<80x1xf32, #tpu.memory_space<vmem>>, %arg6: memref<1x128xf32, #tpu.memory_space<vmem>>) attributes {dimension_semantics = [#tpu.dimension_semantics<parallel>], iteration_bounds = array<i64: 2>, scalar_prefetch = 0 : i64, scratch_operands = 0 : i64, tpu.core_type = #tpu.core_type<tc>, window_params = [{transform_indices = @transform_0, window_bounds = array<i64: 16, 128>}, {pipeline_mode = #tpu.pipeline_mode<synchronous>, transform_indices = @transform_1, window_bounds = array<i64: 32, 16>}, {pipeline_mode = #tpu.pipeline_mode<synchronous>, transform_indices = @transform_2, window_bounds = array<i64: 32, 1>}, {pipeline_mode = #tpu.pipeline_mode<synchronous>, transform_indices = @transform_3, window_bounds = array<i64: 80, 32>}, {pipeline_mode = #tpu.pipeline_mode<synchronous>, transform_indices = @transform_4, window_bounds = array<i64: 80, 1>}, {transform_indices = @transform_5, window_bounds = array<i64: 1, 128>}]} {
    %c0 = arith.constant 0 : index
    %c0_0 = arith.constant 0 : index
    %0 = vector.load %arg2[%c0, %c0_0] : memref<32x16xbf16, #tpu.memory_space<vmem>>, vector<32x16xbf16>
    %c0_1 = arith.constant 0 : index
    %c0_2 = arith.constant 0 : index
    %1 = vector.load %arg1[%c0_1, %c0_2] : memref<16x128xbf16, #tpu.memory_space<vmem>>, vector<16x128xbf16>
    %cst = arith.constant dense<0.000000e+00> : vector<32x128xf32>
    %2 = tpu.matmul %0, %1, %cst {dimension_numbers = #tpu.dot_dimension_numbers<[1], [0], [0], [1], [0, 0, 1, 1], [], []>} : vector<32x16xbf16>, vector<16x128xbf16>, vector<32x128xf32> -> vector<32x128xf32>
    %c0_3 = arith.constant 0 : index
    %c0_4 = arith.constant 0 : index
    %3 = vector.load %arg3[%c0_3, %c0_4] : memref<32x1xf32, #tpu.memory_space<vmem>>, vector<32x1xf32>
    %4 = vector.broadcast %3 : vector<32x1xf32> to vector<32x128xf32>
    %5 = arith.addf %2, %4 : vector<32x128xf32>
    %cst_5 = arith.constant 2.000000e-01 : f32
    %6 = vector.broadcast %cst_5 : f32 to vector<32x128xf32>
    %7 = arith.mulf %6, %5 : vector<32x128xf32>
    %8 = arith.maximumf %5, %7 : vector<32x128xf32>
    %c0_6 = arith.constant 0 : index
    %c0_7 = arith.constant 0 : index
    %9 = vector.load %arg4[%c0_6, %c0_7] : memref<80x32xbf16, #tpu.memory_space<vmem>>, vector<80x32xbf16>
    %10 = arith.truncf %8 : vector<32x128xf32> to vector<32x128xbf16>
    %cst_8 = arith.constant dense<0.000000e+00> : vector<80x128xf32>
    %11 = tpu.matmul %9, %10, %cst_8 {dimension_numbers = #tpu.dot_dimension_numbers<[1], [0], [0], [1], [0, 0, 1, 1], [], []>} : vector<80x32xbf16>, vector<32x128xbf16>, vector<80x128xf32> -> vector<80x128xf32>
    %c0_9 = arith.constant 0 : index
    %c0_10 = arith.constant 0 : index
    %12 = vector.load %arg5[%c0_9, %c0_10] : memref<80x1xf32, #tpu.memory_space<vmem>>, vector<80x1xf32>
    %13 = vector.broadcast %12 : vector<80x1xf32> to vector<80x128xf32>
    %14 = arith.addf %11, %13 : vector<80x128xf32>
    %15 = math.tanh %14 : vector<80x128xf32>
    %16 = vector.extract_strided_slice %15 {offsets = [0, 0], sizes = [40, 128], strides = [1, 1]} : vector<80x128xf32> to vector<40x128xf32>
    %17 = vector.extract_strided_slice %15 {offsets = [40, 0], sizes = [40, 128], strides = [1, 1]} : vector<80x128xf32> to vector<40x128xf32>
    %cst_11 = arith.constant dense<0xFF800000> : vector<128xf32>
    %18 = vector.multi_reduction <maximumf>, %16, %cst_11 [0] : vector<40x128xf32> to vector<128xf32>
    %19 = vector.shape_cast %18 : vector<128xf32> to vector<1x128xf32>
    %cst_12 = arith.constant dense<0xFF800000> : vector<128xf32>
    %20 = vector.multi_reduction <maximumf>, %17, %cst_12 [0] : vector<40x128xf32> to vector<128xf32>
    %21 = vector.shape_cast %20 : vector<128xf32> to vector<1x128xf32>
    %22 = tpu.iota {dimensions = array<i32: 0>} : vector<40x128xi32>
    %c34_i32 = arith.constant 34 : i32
    %23 = vector.broadcast %c34_i32 : i32 to vector<40x128xi32>
    %24 = arith.cmpi slt, %22, %23 : vector<40x128xi32>
    %cst_13 = arith.constant 0x7F800000 : f32
    %25 = vector.broadcast %cst_13 : f32 to vector<40x128xf32>
    %26 = arith.select %24, %17, %25 : vector<40x128xi1>, vector<40x128xf32>
    %cst_14 = arith.constant dense<0x7F800000> : vector<128xf32>
    %27 = vector.multi_reduction <minimumf>, %26, %cst_14 [0] : vector<40x128xf32> to vector<128xf32>
    %28 = vector.shape_cast %27 : vector<128xf32> to vector<1x128xf32>
    %cst_15 = arith.constant 1.500000e+01 : f32
    %29 = vector.broadcast %cst_15 : f32 to vector<1x128xf32>
    %30 = arith.mulf %29, %19 : vector<1x128xf32>
    %cst_16 = arith.constant 0.000000e+00 : f32
    %31 = vector.broadcast %cst_16 : f32 to vector<1x128xf32>
    %32 = arith.subf %31, %30 : vector<1x128xf32>
    %cst_17 = arith.constant 2.000000e+01 : f32
    %33 = vector.broadcast %cst_17 : f32 to vector<1x128xf32>
    %34 = arith.mulf %33, %28 : vector<1x128xf32>
    %cst_18 = arith.constant -7.000000e+00 : f32
    %35 = vector.broadcast %cst_18 : f32 to vector<1x128xf32>
    %36 = arith.addf %35, %34 : vector<1x128xf32>
    %cst_19 = arith.constant 2.000000e+01 : f32
    %37 = vector.broadcast %cst_19 : f32 to vector<1x128xf32>
    %38 = arith.mulf %37, %21 : vector<1x128xf32>
    %cst_20 = arith.constant 1.500000e+01 : f32
    %39 = vector.broadcast %cst_20 : f32 to vector<1x128xf32>
    %40 = arith.subf %39, %38 : vector<1x128xf32>
    %41 = arith.minimumf %36, %40 : vector<1x128xf32>
    %42 = arith.minimumf %32, %41 : vector<1x128xf32>
    %c0_21 = arith.constant 0 : index
    %c0_22 = arith.constant 0 : index
    %43 = vector.load %arg6[%c0_21, %c0_22] : memref<1x128xf32, #tpu.memory_space<vmem>>, vector<1x128xf32>
    tpu.vector_store %arg6[%c0_21, %c0_22], %42 {strides = array<i32>} : memref<1x128xf32, #tpu.memory_space<vmem>>, vector<1x128xf32>,
    return
  }
  func.func @transform_0(%arg0: i32) -> (i32, i32) {
    %c0_i32 = arith.constant 0 : i32
    %c0_i32_0 = arith.constant 0 : i32
    return %c0_i32, %arg0 : i32, i32
  }
  func.func @transform_1(%arg0: i32) -> (i32, i32) {
    %c0_i32 = arith.constant 0 : i32
    %c0_i32_0 = arith.constant 0 : i32
    %c0_i32_1 = arith.constant 0 : i32
    return %c0_i32, %c0_i32_0 : i32, i32
  }
  func.func @transform_2(%arg0: i32) -> (i32, i32) {
    %c0_i32 = arith.constant 0 : i32
    %c0_i32_0 = arith.constant 0 : i32
    %c0_i32_1 = arith.constant 0 : i32
    return %c0_i32, %c0_i32_0 : i32, i32
  }
  func.func @transform_3(%arg0: i32) -> (i32, i32) {
    %c0_i32 = arith.constant 0 : i32
    %c0_i32_0 = arith.constant 0 : i32
    %c0_i32_1 = arith.constant 0 : i32
    return %c0_i32, %c0_i32_0 : i32, i32
  }
  func.func @transform_4(%arg0: i32) -> (i32, i32) {
    %c0_i32 = arith.constant 0 : i32
    %c0_i32_0 = arith.constant 0 : i32
    %c0_i32_1 = arith.constant 0 : i32
    return %c0_i32, %c0_i32_0 : i32, i32
  }
  func.func @transform_5(%arg0: i32) -> (i32, i32) {
    %c0_i32 = arith.constant 0 : i32
    %c0_i32_0 = arith.constant 0 : i32
    return %c0_i32, %arg0 : i32, i32
  }
}

</mosaic_0001>

<llo_original>
// kernel: cond_gen_quant_stl.1
$region0: #{cond_gen_quant_stl.1}
  #allocation0 [shape = 'u32[]', space=smem, size = 0x4, offset = 0x4, fixed_abs, tag = 'smem constant byte address 0x4 - core index']
  #allocation1 [shape = 'u32[144,128]{1,0:T(1,128)}', space=vmem, size = 0x12000, scoped, tag = 'internal scratch']
  %s0 = inlined_call_operand.vmem [shape: bf16[16,256], index: 0, kind: input, shape index: {}]
  %s1 = inlined_call_operand.vmem [shape: bf16[32,16], index: 1, kind: input, shape index: {}]
  %s2 = inlined_call_operand.vmem [shape: f32[32,1], index: 2, kind: input, shape index: {}]
  %s3 = inlined_call_operand.vmem [shape: bf16[80,32], index: 3, kind: input, shape index: {}]
  %s4 = inlined_call_operand.vmem [shape: f32[80,1], index: 4, kind: input, shape index: {}]
  %s5 = inlined_call_operand.hbm [shape: f32[1,256], index: 5, kind: output, shape index: {}]
  %s6 = sld [smem:[#allocation0]]
  $region94: #{cond_gen_quant_stl.1} parent=0
    _
  %s8 = ssub.s32 1, %s6
  %s9 = scalar_select 0, %s8, %s6
  $region1: #{cond_gen_quant_stl.1} parent=0
    #allocation2 [shape = 'u8[8192]{0}', space=vmem, size = 0x2000, scoped, tag = 'input window, operand 0']
    #allocation3 [shape = 'u8[1024]{0}', space=vmem, size = 0x400, scoped, tag = 'output window, operand 0']
    #allocation4 [shape = 's32[2]{0}', space=sflag, size = 0x8, scoped, tag = 'scoped memory for cond_gen_quant_stl.1']
    %10 = vsyncpa [#allocation4], 0
    %s11 = scalar_lea.sflag [#allocation4], 1
    %12 = vsyncpa %s11, 0
    loop: start=0, step=1, limit=4
    $region2: #{cond_gen_quant_stl.1} parent=1 // loop_pre_header
      _
    $region3: #{cond_gen_quant_stl.1} parent=1 // loop_header
      %s14 = sphi 0, %s18
      %p15 = scmp.ge.s32.totalorder %s14, 4
      %s24 = sphi 0, %s26
      %s27 = sphi 0, %s24
      %s28 = sphi 0, %s27
      %s44 = sphi 0, %s28
      %s48 = sphi 0, %s48
      %s50 = sphi 0, %s48
      %s51 = sphi 0, %s50
      %s65 = sphi 0, %s51
      %s69 = sphi 0, %s69
      %s71 = sphi 0, %s69
      %s72 = sphi 0, %s71
      %s86 = sphi 0, %s72
      %s90 = sphi 0, %s90
      %s92 = sphi 0, %s90
      %s93 = sphi 0, %s92
      %s107 = sphi 0, %s93
      %s111 = sphi 0, %s111
      %s113 = sphi 0, %s111
      %s114 = sphi 0, %s113
      %s128 = sphi 0, %s114
      %s134 = sphi 0, %s136
      %s137 = sphi 0, %s134
      %s138 = sphi 0, %s137
      %s154 = sphi 0, %s138
    $region4: #{cond_gen_quant_stl.1} parent=1 // loop_header_branch
      %17 = sbr.rel (%p15) target = $region8
    $region5: #{cond_gen_quant_stl.1} parent=1 // loop_body
      %s19 = ssub.s32 %s14, 1
      %s20 = ssub.s32 %s14, 2
      %s21 = sadd.s32 %s14, 1
      %s22 = ssub.s32 %s14, %s21
      %p23 = scmp.eq.s32.totalorder %s22, 0
      %s25 = sadd.s32 %s24, 1
      %s26 = scalar_select %p23, %s24, %s25
      %p29 = pneg %p23
      %p30 = scmp.eq.s32.totalorder %s14, 1
      %p31 = por %p29, %p30
      %p32 = scmp.ne.s32.totalorder %s24, %s27
      %p33 = scmp.eq.s32.totalorder %s14, 0
      %p34 = por %p32, %p33
      %p35 = scmp.ne.s32.totalorder %s24, %s27
      %p36 = scmp.eq.s32.totalorder %s19, 1
      %p37 = por %p35, %p36
      %p38 = scmp.ne.s32.totalorder %s27, %s28
      %p39 = scmp.eq.s32.totalorder %s19, 0
      %p40 = por %p38, %p39
      %p41 = scmp.ne.s32.totalorder %s27, %s28
      %p42 = scmp.eq.s32.totalorder %s20, 1
      %p43 = por %p41, %p42
      %p45 = scmp.ne.s32.totalorder %s28, %s44
      %p46 = scmp.eq.s32.totalorder %s20, 0
      %p47 = por %p45, %p46
      %s49 = sadd.s32 %s48, 1
      %p52 = scmp.eq.s32.totalorder %s14, 1
      %p53 = scmp.ne.s32.totalorder %s48, %s50
      %p54 = scmp.eq.s32.totalorder %s14, 0
      %p55 = por %p53, %p54
      %p56 = scmp.ne.s32.totalorder %s48, %s50
      %p57 = scmp.eq.s32.totalorder %s19, 1
      %p58 = por %p56, %p57
      %p59 = scmp.ne.s32.totalorder %s50, %s51
      %p60 = scmp.eq.s32.totalorder %s19, 0
      %p61 = por %p59, %p60
      %p62 = scmp.ne.s32.totalorder %s50, %s51
      %p63 = scmp.eq.s32.totalorder %s20, 1
      %p64 = por %p62, %p63
      %p66 = scmp.ne.s32.totalorder %s51, %s65
      %p67 = scmp.eq.s32.totalorder %s20, 0
      %p68 = por %p66, %p67
      %s70 = sadd.s32 %s69, 1
      %p73 = scmp.eq.s32.totalorder %s14, 1
      %p74 = scmp.ne.s32.totalorder %s69, %s71
      %p75 = scmp.eq.s32.totalorder %s14, 0
      %p76 = por %p74, %p75
      %p77 = scmp.ne.s32.totalorder %s69, %s71
      %p78 = scmp.eq.s32.totalorder %s19, 1
      %p79 = por %p77, %p78
      %p80 = scmp.ne.s32.totalorder %s71, %s72
      %p81 = scmp.eq.s32.totalorder %s19, 0
      %p82 = por %p80, %p81
      %p83 = scmp.ne.s32.totalorder %s71, %s72
      %p84 = scmp.eq.s32.totalorder %s20, 1
      %p85 = por %p83, %p84
      %p87 = scmp.ne.s32.totalorder %s72, %s86
      %p88 = scmp.eq.s32.totalorder %s20, 0
      %p89 = por %p87, %p88
      %s91 = sadd.s32 %s90, 1
      %p94 = scmp.eq.s32.totalorder %s14, 1
      %p95 = scmp.ne.s32.totalorder %s90, %s92
      %p96 = scmp.eq.s32.totalorder %s14, 0
      %p97 = por %p95, %p96
      %p98 = scmp.ne.s32.totalorder %s90, %s92
      %p99 = scmp.eq.s32.totalorder %s19, 1
      %p100 = por %p98, %p99
      %p101 = scmp.ne.s32.totalorder %s92, %s93
      %p102 = scmp.eq.s32.totalorder %s19, 0
      %p103 = por %p101, %p102
      %p104 = scmp.ne.s32.totalorder %s92, %s93
      %p105 = scmp.eq.s32.totalorder %s20, 1
      %p106 = por %p104, %p105
      %p108 = scmp.ne.s32.totalorder %s93, %s107
      %p109 = scmp.eq.s32.totalorder %s20, 0
      %p110 = por %p108, %p109
      %s112 = sadd.s32 %s111, 1
      %p115 = scmp.eq.s32.totalorder %s14, 1
      %p116 = scmp.ne.s32.totalorder %s111, %s113
      %p117 = scmp.eq.s32.totalorder %s14, 0
      %p118 = por %p116, %p117
      %p119 = scmp.ne.s32.totalorder %s111, %s113
      %p120 = scmp.eq.s32.totalorder %s19, 1
      %p121 = por %p119, %p120
      %p122 = scmp.ne.s32.totalorder %s113, %s114
      %p123 = scmp.eq.s32.totalorder %s19, 0
      %p124 = por %p122, %p123
      %p125 = scmp.ne.s32.totalorder %s113, %s114
      %p126 = scmp.eq.s32.totalorder %s20, 1
      %p127 = por %p125, %p126
      %p129 = scmp.ne.s32.totalorder %s114, %s128
      %p130 = scmp.eq.s32.totalorder %s20, 0
      %p131 = por %p129, %p130
      %s132 = ssub.s32 %s14, %s21
      %p133 = scmp.eq.s32.totalorder %s132, 0
      %s135 = sadd.s32 %s134, 1
      %s136 = scalar_select %p133, %s134, %s135
      %p139 = pneg %p133
      %p140 = scmp.eq.s32.totalorder %s14, 1
      %p141 = por %p139, %p140
      %p142 = scmp.ne.s32.totalorder %s134, %s137
      %p143 = scmp.eq.s32.totalorder %s14, 0
      %p144 = por %p142, %p143
      %p145 = scmp.ne.s32.totalorder %s134, %s137
      %p146 = scmp.eq.s32.totalorder %s19, 1
      %p147 = por %p145, %p146
      %p148 = scmp.ne.s32.totalorder %s137, %s138
      %p149 = scmp.eq.s32.totalorder %s19, 0
      %p150 = por %p148, %p149
      %p151 = scmp.ne.s32.totalorder %s137, %s138
      %p152 = scmp.eq.s32.totalorder %s20, 1
      %p153 = por %p151, %p152
      %p155 = scmp.ne.s32.totalorder %s138, %s154
      %p156 = scmp.eq.s32.totalorder %s20, 0
      %p157 = por %p155, %p156
      %p158 = scmp.le.s32.totalorder 1, %s14
      %p159 = scmp.lt.s32.totalorder %s14, 3
      %p160 = pnand %p158, %p159
      %p161 = pneg %p160
      // Predicated region
      $region9: #{cond_gen_quant_stl.1} parent=5 // pred_check
        _
      $region10: #{cond_gen_quant_stl.1} parent=5 // pred_check_branch
        %163 = sbr.rel (%p160) target = $region12
      $region11: #{cond_gen_quant_stl.1} parent=5 // pred_region
        %s164 = ssub.s32 %s14, 1
        // Predicated region
        $region13: #{cond_gen_quant_stl.1} parent=11 // pred_check
          %p165 = pneg %p61
        $region14: #{cond_gen_quant_stl.1} parent=11 // pred_check_branch
          %167 = sbr.rel (%p165) target = $region16
        $region15: #{cond_gen_quant_stl.1} parent=11 // pred_region
          _
        $region16: #{cond_gen_quant_stl.1} parent=11 // pred_fallthru
          _
        // Predicated region
        $region17: #{cond_gen_quant_stl.1} parent=11 // pred_check
          %p168 = pneg %p82
        $region18: #{cond_gen_quant_stl.1} parent=11 // pred_check_branch
          %170 = sbr.rel (%p168) target = $region20
        $region19: #{cond_gen_quant_stl.1} parent=11 // pred_region
          _
        $region20: #{cond_gen_quant_stl.1} parent=11 // pred_fallthru
          _
        // Predicated region
        $region21: #{cond_gen_quant_stl.1} parent=11 // pred_check
          %p171 = pneg %p103
        $region22: #{cond_gen_quant_stl.1} parent=11 // pred_check_branch
          %173 = sbr.rel (%p171) target = $region24
        $region23: #{cond_gen_quant_stl.1} parent=11 // pred_region
          _
        $region24: #{cond_gen_quant_stl.1} parent=11 // pred_fallthru
          _
        // Predicated region
        $region25: #{cond_gen_quant_stl.1} parent=11 // pred_check
          %p174 = pneg %p124
        $region26: #{cond_gen_quant_stl.1} parent=11 // pred_check_branch
          %176 = sbr.rel (%p174) target = $region28
        $region27: #{cond_gen_quant_stl.1} parent=11 // pred_region
          _
        $region28: #{cond_gen_quant_stl.1} parent=11 // pred_fallthru
          _
      $region12: #{cond_gen_quant_stl.1} parent=5 // pred_fallthru
        _
      %p177 = scmp.lt.s32.totalorder %s14, 2
      // Predicated region
      $region29: #{cond_gen_quant_stl.1} parent=5 // pred_check
        %p178 = pneg %p177
      $region30: #{cond_gen_quant_stl.1} parent=5 // pred_check_branch
        %180 = sbr.rel (%p178) target = $region32
      $region31: #{cond_gen_quant_stl.1} parent=5 // pred_region
        // Predicated region
        $region33: #{cond_gen_quant_stl.1} parent=31 // pred_check
          %p181 = pneg %p34
        $region34: #{cond_gen_quant_stl.1} parent=31 // pred_check_branch
          %183 = sbr.rel (%p181) target = $region36
        $region35: #{cond_gen_quant_stl.1} parent=31 // pred_region
          %s184 = sand.u32 %s24, 1
          %s185 = sand.u32 %s24, 1
          %s186 = smul.addr %s185, 8
          %s187 = scalar_lea.vmem [#allocation2], %s186
          %s188 = smul.addr %s14, 4
          %s189 = scalar_lea.vmem %s0, %s188
          // Predicated region
          $region37: #{cond_gen_quant_stl.1} parent=35 // pred_check
            _
          $region38: #{cond_gen_quant_stl.1} parent=35 // pred_check_branch
            %191 = sbr.rel (0) target = $region40
          $region39: #{cond_gen_quant_stl.1} parent=35 // pred_region
            // Predicated region
            $region41: #{cond_gen_quant_stl.1} parent=39 // pred_check
              _
            $region42: #{cond_gen_quant_stl.1} parent=39 // pred_check_branch
              %193 = sbr.rel target = $region44
            $region43: #{cond_gen_quant_stl.1} parent=39 // pred_region
              // Predicated region
              $region56: #{cond_gen_quant_stl.1} parent=43 // pred_check
                _
              $region57: #{cond_gen_quant_stl.1} parent=43 // pred_check_branch
                %210 = sbr.rel (0) target = $region59
              $region58: #{cond_gen_quant_stl.1} parent=43 // pred_region
                loop: start=0, step=1, limit=1
                $region60: #{cond_gen_quant_stl.1} parent=58 // loop_pre_header
                  _
                $region61: #{cond_gen_quant_stl.1} parent=58 // loop_header
                  %s212 = sphi 0, %s216
                  %p213 = scmp.ge.s32.totalorder %s212, 1
                  %s217 = sphi %s189, %s189
                  %s218 = sphi %s187, %s187
                $region62: #{cond_gen_quant_stl.1} parent=58 // loop_header_branch
                  %215 = sbr.rel (%p213) target = $region66
                $region63: #{cond_gen_quant_stl.1} parent=58 // loop_body
                  _
                $region64: #{cond_gen_quant_stl.1} parent=58 // loop_footer
                  %s216 = sadd.s32 1, %s212
                $region65: #{cond_gen_quant_stl.1} parent=58 // loop_footer_branch
                  %211 = sbr.rel target = $region61
                $region66: #{cond_gen_quant_stl.1} parent=58 // loop_exit
                  _
                loop: start=0, step=1, limit=1
                $region67: #{cond_gen_quant_stl.1} parent=58 // loop_pre_header
                  _
                $region68: #{cond_gen_quant_stl.1} parent=58 // loop_header
                  %s221 = sphi 0, %s225
                  %p222 = scmp.ge.s32.totalorder %s221, 1
                  %s226 = sphi %s189, %s189
                  %s227 = sphi %s187, %s187
                $region69: #{cond_gen_quant_stl.1} parent=58 // loop_header_branch
                  %224 = sbr.rel (%p222) target = $region73
                $region70: #{cond_gen_quant_stl.1} parent=58 // loop_body
                  %v228 = vld [vmem:[%s226] sm:$0xf]
                  %229 = vst [vmem:[%s227] sm:$0xf] %v228
                  %v230 = vld [vmem:[%s226 + $0x8] sm:$0xf]
                  %231 = vst [vmem:[%s227 + $0x4] sm:$0xf] %v230
                $region71: #{cond_gen_quant_stl.1} parent=58 // loop_footer
                  %s225 = sadd.s32 1, %s221
                $region72: #{cond_gen_quant_stl.1} parent=58 // loop_footer_branch
                  %220 = sbr.rel target = $region68
                $region73: #{cond_gen_quant_stl.1} parent=58 // loop_exit
                  _
              $region59: #{cond_gen_quant_stl.1} parent=43 // pred_fallthru
                _
            $region44: #{cond_gen_quant_stl.1} parent=39 // pred_fallthru
              _
            // Predicated region
            $region45: #{cond_gen_quant_stl.1} parent=39 // pred_check
              _
            $region46: #{cond_gen_quant_stl.1} parent=39 // pred_check_branch
              %195 = sbr.rel (0) target = $region48
            $region47: #{cond_gen_quant_stl.1} parent=39 // pred_region
              loop: start=0, step=1, limit=1
              $region49: #{cond_gen_quant_stl.1} parent=47 // loop_pre_header
                _
              $region50: #{cond_gen_quant_stl.1} parent=47 // loop_header
                %s198 = sphi 0, %s202
                %p199 = scmp.ge.s32.totalorder %s198, 1
                %s203 = sphi %s189, %s189
                %s204 = sphi %s187, %s187
              $region51: #{cond_gen_quant_stl.1} parent=47 // loop_header_branch
                %201 = sbr.rel (%p199) target = $region55
              $region52: #{cond_gen_quant_stl.1} parent=47 // loop_body
                %v205 = vld [vmem:[%s203] sm:$0xf]
                %206 = vst [vmem:[%s204] sm:$0xf] %v205
                %v207 = vld [vmem:[%s203 + $0x8] sm:$0xf]
                %208 = vst [vmem:[%s204 + $0x4] sm:$0xf] %v207
              $region53: #{cond_gen_quant_stl.1} parent=47 // loop_footer
                %s202 = sadd.s32 1, %s198
              $region54: #{cond_gen_quant_stl.1} parent=47 // loop_footer_branch
                %197 = sbr.rel target = $region50
              $region55: #{cond_gen_quant_stl.1} parent=47 // loop_exit
                _
            $region48: #{cond_gen_quant_stl.1} parent=39 // pred_fallthru
              _
          $region40: #{cond_gen_quant_stl.1} parent=35 // pred_fallthru
            _
          %232 = vnop
        $region36: #{cond_gen_quant_stl.1} parent=31 // pred_fallthru
          _
      $region32: #{cond_gen_quant_stl.1} parent=5 // pred_fallthru
        _
      %p233 = scmp.le.s32.totalorder 1, %s14
      %p234 = scmp.lt.s32.totalorder %s14, 3
      %p235 = pnand %p233, %p234
      %p236 = pneg %p235
      // Predicated region
      $region74: #{cond_gen_quant_stl.1} parent=5 // pred_check
        _
      $region75: #{cond_gen_quant_stl.1} parent=5 // pred_check_branch
        %238 = sbr.rel (%p235) target = $region77
      $region76: #{cond_gen_quant_stl.1} parent=5 // pred_region
        %s239 = ssub.s32 %s14, 1
        %s240 = sand.u32 %s27, 1
        %s241 = sand.u32 %s27, 1
        %s242 = smul.addr %s241, 8
        %s243 = scalar_lea.vmem [#allocation2], %s242
        // Predicated region
        $region78: #{cond_gen_quant_stl.1} parent=76 // pred_check
          %p244 = pneg %p40
        $region79: #{cond_gen_quant_stl.1} parent=76 // pred_check_branch
          %246 = sbr.rel (%p244) target = $region81
        $region80: #{cond_gen_quant_stl.1} parent=76 // pred_region
          _
        $region81: #{cond_gen_quant_stl.1} parent=76 // pred_fallthru
          _
        %s247 = sand.u32 %s27, 1
        %s248 = sand.u32 %s27, 1
        %s249 = smul.addr %s248, 8
        %s250 = scalar_lea.vmem [#allocation2], %s249
        %p251 = pneg %p40
        %p252 = pneg %p37
        %p253 = pneg %p61
        %p254 = pneg %p58
        %p255 = pneg %p82
        %p256 = pneg %p79
        %p257 = pneg %p103
        %p258 = pneg %p100
        %p259 = pneg %p124
        %p260 = pneg %p121
        %p261 = pneg %p150
        %p262 = pneg %p147
        %s263 = sand.u32 %s137, 1
        %s264 = scalar_lea.sflag [#allocation4], %s263
        %s265 = sand.u32 %s137, 1
        %s266 = scalar_lea.vmem [#allocation3], %s265
        %v268 = vld [vmem:[%s1] sm:$0xf]
        %v269 = vld [vmem:[%s1 + $0x4] sm:$0xf]
        %v270 = vld [vmem:[%s1 + $0x8] sm:$0xf]
        %v271 = vld [vmem:[%s1 + $0xc] sm:$0xf]
        %v272 = vld [vmem:[%s243] sm:$0xf]
        %v273 = vld [vmem:[%s243 + $0x4] sm:$0xf]
        %v274 = vld [vmem:[%s2] sm:$0xff]
        %v275 = vld [vmem:[%s2 + $0x8] sm:$0xff]
        %v276 = vld [vmem:[%s2 + $0x10] sm:$0xff]
        %v277 = vld [vmem:[%s2 + $0x18] sm:$0xff]
        %279 = vset.pattern.permute.xlu0 0
        %280 = vperm.xlu0 %279, %v274
        %v281 = vpop.permute.xlu0 %280
        %284 = vset.pattern.permute.xlu0 0
        %285 = vperm.xlu0 %284, %v275
        %v286 = vpop.permute.xlu0 %285
        %289 = vset.pattern.permute.xlu0 0
        %290 = vperm.xlu0 %289, %v276
        %v291 = vpop.permute.xlu0 %290
        %294 = vset.pattern.permute.xlu0 0
        %295 = vperm.xlu0 %294, %v277
        %v296 = vpop.permute.xlu0 %295
        %v302 = vunpack.c.l.b16 %v268
        %v303 = vunpack.c.l.b16 %v269
        %v304 = vunpack.c.l.b16 %v270
        %v305 = vunpack.c.l.b16 %v271
        %v306 = vpack.c.b16 %v303, %v302
        %v307 = vpack.c.b16 %v305, %v304
        %v310 = vunpack.c.l.b16 %v272
        %v311 = vunpack.c.l.b16 %v273
        %v312 = vpack.c.b16 %v311, %v310
        %vm314 = vcmask 130048
        %v316 = vsel %vm314, %v306, 0
        %v319 = vsel %vm314, %v307, 0
        %321 = vmatprep.subr.bf16.mxu0 0
        %322 = vmatpush1.bf16.msra.mxu0 %v312
        %323 = vmatprep.subr.bf16.mxu0 0
        %324 = vmatpush1.bf16.msra.mxu0 0
        %325 = vmatprep.subr.bf16.mxu0 0
        %326 = vmatpush1.bf16.msra.mxu0 0
        %327 = vmatprep.subr.bf16.mxu0 0
        %328 = vmatpush1.bf16.msra.mxu0 0
        %329 = vmatprep.subr.bf16.mxu0 0
        %330 = vmatpush1.bf16.msra.mxu0 0
        %331 = vmatprep.subr.bf16.mxu0 0
        %332 = vmatpush1.bf16.msra.mxu0 0
        %333 = vmatprep.subr.bf16.mxu0 0
        %334 = vmatpush1.bf16.msra.mxu0 0
        %335 = vmatprep.subr.bf16.mxu0 0
        %336 = vmatpush1.bf16.msra.mxu0 0
        %337 = vmatprep.subr.bf16.mxu0 0
        %338 = vmatpush1.bf16.msra.mxu0 0
        %339 = vmatprep.subr.bf16.mxu0 0
        %340 = vmatpush1.bf16.msra.mxu0 0
        %341 = vmatprep.subr.bf16.mxu0 0
        %342 = vmatpush1.bf16.msra.mxu0 0
        %343 = vmatprep.subr.bf16.mxu0 0
        %344 = vmatpush1.bf16.msra.mxu0 0
        %345 = vmatprep.subr.bf16.mxu0 0
        %346 = vmatpush1.bf16.msra.mxu0 0
        %347 = vmatprep.subr.bf16.mxu0 0
        %348 = vmatpush1.bf16.msra.mxu0 0
        %349 = vmatprep.subr.bf16.mxu0 0
        %350 = vmatpush1.bf16.msra.mxu0 0
        %351 = vmatprep.subr.bf16.mxu0 0
        %352 = vmatpush1.bf16.msra.mxu0 0
        %353 = vmatprep.mubr.bf16.mxu0 0
        %354 = vmatmul.mubr.bf16.gmra.mrb[0].mxu0 %v316
        %v355 = vpop.f32.mrb[0].mxu0
        %v356 = vadd.f32 %v281, %v355
        %v357 = vpop.f32.mrb[0].mxu0
        %v358 = vpop.f32.mrb[0].mxu0
        %v359 = vadd.f32 %v286, %v358
        %v360 = vpop.f32.mrb[0].mxu0
        %361 = vmatprep.mubr.bf16.mxu0 0
        %362 = vmatmul.mubr.bf16.gmra.mrb[0].mxu0 %v319
        %v363 = vpop.f32.mrb[0].mxu0
        %v364 = vadd.f32 %v291, %v363
        %v365 = vpop.f32.mrb[0].mxu0
        %v366 = vpop.f32.mrb[0].mxu0
        %v367 = vadd.f32 %v296, %v366
        %v368 = vpop.f32.mrb[0].mxu0
        %369 = vdwg.mxu0
        %v370 = vmul.f32 %v356, 0.2
        %v371 = vmul.f32 %v359, 0.2
        %v372 = vmul.f32 %v364, 0.2
        %v373 = vmul.f32 %v367, 0.2
        %v374 = vmax.f32 %v356, %v370
        %v375 = vmax.f32 %v359, %v371
        %v376 = vmax.f32 %v364, %v372
        %v377 = vmax.f32 %v367, %v373
        %v378 = vld [vmem:[%s3] sm:$0xf]
        %v379 = vld [vmem:[%s3 + $0x4] sm:$0xf]
        %v380 = vld [vmem:[%s3 + $0x8] sm:$0xf]
        %v381 = vld [vmem:[%s3 + $0xc] sm:$0xf]
        %v382 = vld [vmem:[%s3 + $0x10] sm:$0xf]
        %v383 = vld [vmem:[%s3 + $0x14] sm:$0xf]
        %v384 = vld [vmem:[%s3 + $0x18] sm:$0xf]
        %v385 = vld [vmem:[%s3 + $0x1c] sm:$0xf]
        %v386 = vld [vmem:[%s3 + $0x20] sm:$0xf]
        %v387 = vld [vmem:[%s3 + $0x24] sm:$0xf]
        %v388 = vpack.c.bf16 %v375, %v374
        %v389 = vpack.c.bf16 %v377, %v376
        %v390 = vld [vmem:[%s4] sm:$0xff]
        %v391 = vld [vmem:[%s4 + $0x8] sm:$0xff]
        %v392 = vld [vmem:[%s4 + $0x10] sm:$0xff]
        %v393 = vld [vmem:[%s4 + $0x18] sm:$0xff]
        %v394 = vld [vmem:[%s4 + $0x20] sm:$0xff]
        %v395 = vld [vmem:[%s4 + $0x28] sm:$0xff]
        %v396 = vld [vmem:[%s4 + $0x30] sm:$0xff]
        %v397 = vld [vmem:[%s4 + $0x38] sm:$0xff]
        %v398 = vld [vmem:[%s4 + $0x40] sm:$0xff]
        %v399 = vld [vmem:[%s4 + $0x48] sm:$0xff]
        %401 = vset.pattern.permute.xlu0 0
        %402 = vperm.xlu0 %401, %v390
        %v403 = vpop.permute.xlu0 %402
        %406 = vset.pattern.permute.xlu0 0
        %407 = vperm.xlu0 %406, %v391
        %v408 = vpop.permute.xlu0 %407
        %411 = vset.pattern.permute.xlu0 0
        %412 = vperm.xlu0 %411, %v392
        %v413 = vpop.permute.xlu0 %412
        %416 = vset.pattern.permute.xlu0 0
        %417 = vperm.xlu0 %416, %v393
        %v418 = vpop.permute.xlu0 %417
        %421 = vset.pattern.permute.xlu0 0
        %422 = vperm.xlu0 %421, %v394
        %v423 = vpop.permute.xlu0 %422
        %426 = vset.pattern.permute.xlu0 0
        %427 = vperm.xlu0 %426, %v395
        %v428 = vpop.permute.xlu0 %427
        %431 = vset.pattern.permute.xlu0 0
        %432 = vperm.xlu0 %431, %v396
        %v433 = vpop.permute.xlu0 %432
        %436 = vset.pattern.permute.xlu0 0
        %437 = vperm.xlu0 %436, %v397
        %v438 = vpop.permute.xlu0 %437
        %441 = vset.pattern.permute.xlu0 0
        %442 = vperm.xlu0 %441, %v398
        %v443 = vpop.permute.xlu0 %442
        %446 = vset.pattern.permute.xlu0 0
        %447 = vperm.xlu0 %446, %v399
        %v448 = vpop.permute.xlu0 %447
        %v460 = vunpack.c.l.b16 %v378
        %v461 = vunpack.c.l.b16 %v379
        %v462 = vunpack.c.l.b16 %v380
        %v463 = vunpack.c.l.b16 %v381
        %v464 = vunpack.c.l.b16 %v382
        %v465 = vunpack.c.l.b16 %v383
        %v466 = vunpack.c.l.b16 %v384
        %v467 = vunpack.c.l.b16 %v385
        %v468 = vunpack.c.l.b16 %v386
        %v469 = vunpack.c.l.b16 %v387
        %v470 = vpack.c.b16 %v461, %v460
        %v471 = vpack.c.b16 %v463, %v462
        %v472 = vpack.c.b16 %v465, %v464
        %v473 = vpack.c.b16 %v467, %v466
        %v474 = vpack.c.b16 %v469, %v468
        %vm475 = vcmask 261120
        %v477 = vsel %vm475, %v470, 0
        %v480 = vsel %vm475, %v471, 0
        %v483 = vsel %vm475, %v472, 0
        %v486 = vsel %vm475, %v473, 0
        %v489 = vsel %vm475, %v474, 0
        %491 = vmatprep.subr.bf16.mxu0 0
        %492 = vmatpush1.bf16.msra.mxu0 %v388
        %493 = vmatprep.subr.bf16.mxu0 0
        %494 = vmatpush1.bf16.msra.mxu0 %v389
        %495 = vmatprep.subr.bf16.mxu0 0
        %496 = vmatpush1.bf16.msra.mxu0 0
        %497 = vmatprep.subr.bf16.mxu0 0
        %498 = vmatpush1.bf16.msra.mxu0 0
        %499 = vmatprep.subr.bf16.mxu0 0
        %500 = vmatpush1.bf16.msra.mxu0 0
        %501 = vmatprep.subr.bf16.mxu0 0
        %502 = vmatpush1.bf16.msra.mxu0 0
        %503 = vmatprep.subr.bf16.mxu0 0
        %504 = vmatpush1.bf16.msra.mxu0 0
        %505 = vmatprep.subr.bf16.mxu0 0
        %506 = vmatpush1.bf16.msra.mxu0 0
        %507 = vmatprep.subr.bf16.mxu0 0
        %508 = vmatpush1.bf16.msra.mxu0 0
        %509 = vmatprep.subr.bf16.mxu0 0
        %510 = vmatpush1.bf16.msra.mxu0 0
        %511 = vmatprep.subr.bf16.mxu0 0
        %512 = vmatpush1.bf16.msra.mxu0 0
        %513 = vmatprep.subr.bf16.mxu0 0
        %514 = vmatpush1.bf16.msra.mxu0 0
        %515 = vmatprep.subr.bf16.mxu0 0
        %516 = vmatpush1.bf16.msra.mxu0 0
        %517 = vmatprep.subr.bf16.mxu0 0
        %518 = vmatpush1.bf16.msra.mxu0 0
        %519 = vmatprep.subr.bf16.mxu0 0
        %520 = vmatpush1.bf16.msra.mxu0 0
        %521 = vmatprep.subr.bf16.mxu0 0
        %522 = vmatpush1.bf16.msra.mxu0 0
        %523 = vmatprep.mubr.bf16.mxu0 0
        %524 = vmatmul.mubr.bf16.gmra.mrb[0].mxu0 %v477
        %v525 = vpop.f32.mrb[0].mxu0
        %v526 = vadd.f32 %v403, %v525
        %v527 = vpop.f32.mrb[0].mxu0
        %v528 = vpop.f32.mrb[0].mxu0
        %v529 = vadd.f32 %v408, %v528
        %v530 = vpop.f32.mrb[0].mxu0
        %531 = vmatprep.mubr.bf16.mxu0 0
        %532 = vmatmul.mubr.bf16.gmra.mrb[0].mxu0 %v480
        %v533 = vpop.f32.mrb[0].mxu0
        %v534 = vadd.f32 %v413, %v533
        %v535 = vpop.f32.mrb[0].mxu0
        %v536 = vpop.f32.mrb[0].mxu0
        %v537 = vadd.f32 %v418, %v536
        %v538 = vpop.f32.mrb[0].mxu0
        %539 = vmatprep.mubr.bf16.mxu0 0
        %540 = vmatmul.mubr.bf16.gmra.mrb[0].mxu0 %v483
        %v541 = vpop.f32.mrb[0].mxu0
        %v542 = vadd.f32 %v423, %v541
        %v543 = vpop.f32.mrb[0].mxu0
        %v544 = vpop.f32.mrb[0].mxu0
        %v545 = vadd.f32 %v428, %v544
        %v546 = vpop.f32.mrb[0].mxu0
        %547 = vmatprep.mubr.bf16.mxu0 0
        %548 = vmatmul.mubr.bf16.gmra.mrb[0].mxu0 %v486
        %v549 = vpop.f32.mrb[0].mxu0
        %v550 = vadd.f32 %v433, %v549
        %v551 = vpop.f32.mrb[0].mxu0
        %v552 = vpop.f32.mrb[0].mxu0
        %v553 = vadd.f32 %v438, %v552
        %v554 = vpop.f32.mrb[0].mxu0
        %555 = vmatprep.mubr.bf16.mxu0 0
        %556 = vmatmul.mubr.bf16.gmra.mrb[0].mxu0 %v489
        %v557 = vpop.f32.mrb[0].mxu0
        %v558 = vadd.f32 %v443, %v557
        %v559 = vpop.f32.mrb[0].mxu0
        %v560 = vpop.f32.mrb[0].mxu0
        %v561 = vadd.f32 %v448, %v560
        %v562 = vpop.f32.mrb[0].mxu0
        %563 = vdwg.mxu0
        %v564 = vtanh.pop %v526
        %v565 = vtanh.pop %v529
        %v566 = vtanh.pop %v534
        %v567 = vtanh.pop %v537
        %v568 = vtanh.pop %v542
        %v569 = vtanh.pop %v545
        %v570 = vtanh.pop %v550
        %v571 = vtanh.pop %v553
        %v572 = vtanh.pop %v558
        %v573 = vtanh.pop %v561
        %v574 = vmax.f32 %v564, %v568
        %v575 = vmax.f32 %v574, %v565
        %v576 = vmax.f32 %v566, %v567
        %v577 = vmax.f32 %v575, %v576
        %v578 = vrot.slane %v577, 4
        %v579 = vmax.f32 %v577, %v578
        %v580 = vrot.slane %v579, 2
        %v581 = vmax.f32 %v579, %v580
        %v582 = vrot.slane %v581, 1
        %v583 = vmax.f32 %v581, %v582
        %v584 = vmax.f32 %v569, %v573
        %v585 = vmax.f32 %v584, %v570
        %v586 = vmax.f32 %v571, %v572
        %v587 = vmax.f32 %v585, %v586
        %v588 = vrot.slane %v587, 4
        %v589 = vmax.f32 %v587, %v588
        %v590 = vrot.slane %v589, 2
        %v591 = vmax.f32 %v589, %v590
        %v592 = vrot.slane %v591, 1
        %v593 = vmax.f32 %v591, %v592
        %v594 = vlaneseq
        %v595 = vshrl.u32 %v594, 7
        %v596 = vadd.s32 %v595, 8
        %v597 = vadd.s32 %v595, 16
        %v598 = vadd.s32 %v595, 24
        %v599 = vadd.s32 %v595, 32
        %vm600 = vcmp.lt.s32.totalorder %v595, 34
        %vm601 = vcmp.lt.s32.totalorder %v596, 34
        %vm602 = vcmp.lt.s32.totalorder %v597, 34
        %vm603 = vcmp.lt.s32.totalorder %v598, 34
        %vm604 = vcmp.lt.s32.totalorder %v599, 34
        %v605 = vsel %vm600, %v569, inf
        %v606 = vsel %vm601, %v570, inf
        %v607 = vsel %vm602, %v571, inf
        %v608 = vsel %vm603, %v572, inf
        %v609 = vsel %vm604, %v573, inf
        %v610 = vmin.f32 %v605, %v609
        %v611 = vmin.f32 %v610, %v606
        %v612 = vmin.f32 %v607, %v608
        %v613 = vmin.f32 %v611, %v612
        %v614 = vrot.slane %v613, 4
        %v615 = vmin.f32 %v613, %v614
        %v616 = vrot.slane %v615, 2
        %v617 = vmin.f32 %v615, %v616
        %v618 = vrot.slane %v617, 1
        %v619 = vmin.f32 %v617, %v618
        %v620 = vmul.f32 %v583, 15.0
        %v621 = vsub.f32 0.0, %v620
        %v622 = vmul.f32 %v619, 20.0
        %v623 = vadd.f32 %v622, -7.0
        %v624 = vmul.f32 %v593, 20.0
        %v625 = vsub.f32 15.0, %v624
        %v626 = vmin.f32 %v623, %v625
        %v627 = vmin.f32 %v621, %v626
        %628 = vst [vmem:[%s266] sm:$0x1] %v627
        %s629 = sand.u32 %s137, 1
        %s630 = scalar_lea.sflag [#allocation4], %s629
        %s631 = sand.u32 %s137, 1
        %s632 = scalar_lea.vmem [#allocation3], %s631
        // Predicated region
        $region82: #{cond_gen_quant_stl.1} parent=76 // pred_check
          %p633 = pneg %p147
        $region83: #{cond_gen_quant_stl.1} parent=76 // pred_check_branch
          %635 = sbr.rel (%p633) target = $region85
        $region84: #{cond_gen_quant_stl.1} parent=76 // pred_region
          %s637 = ssub.s32 16, 16
          %638 = vsyncadd %s630, %s637
          %s639 = smul.addr %s19, 16
          %s640 = scalar_lea.hbm %s5, %s639
          %s642 = sshll.u32 %s632, 4
          %s643 = int_to_ptr.vmem [resolvable:$true] %s642
          %645 = dma.vmem_to_hbm [thread:$0]  %s643, 16, %s640, %s630
        $region85: #{cond_gen_quant_stl.1} parent=76 // pred_fallthru
          _
      $region77: #{cond_gen_quant_stl.1} parent=5 // pred_fallthru
        _
      %p646 = scmp.le.s32.totalorder 2, %s14
      // Predicated region
      $region86: #{cond_gen_quant_stl.1} parent=5 // pred_check
        %p647 = pneg %p646
      $region87: #{cond_gen_quant_stl.1} parent=5 // pred_check_branch
        %649 = sbr.rel (%p647) target = $region89
      $region88: #{cond_gen_quant_stl.1} parent=5 // pred_region
        %s650 = ssub.s32 %s14, 2
        // Predicated region
        $region90: #{cond_gen_quant_stl.1} parent=88 // pred_check
          %p651 = pneg %p153
        $region91: #{cond_gen_quant_stl.1} parent=88 // pred_check_branch
          %653 = sbr.rel (%p651) target = $region93
        $region92: #{cond_gen_quant_stl.1} parent=88 // pred_region
          %s654 = sand.u32 %s138, 1
          %s655 = scalar_lea.sflag [#allocation4], %s654
          %s656 = sand.u32 %s138, 1
          %s657 = scalar_lea.vmem [#allocation3], %s656
          %658 = dma.done %s655, 16
        $region93: #{cond_gen_quant_stl.1} parent=88 // pred_fallthru
          _
      $region89: #{cond_gen_quant_stl.1} parent=5 // pred_fallthru
        _
    $region6: #{cond_gen_quant_stl.1} parent=1 // loop_footer
      %s18 = sadd.s32 1, %s14
    $region7: #{cond_gen_quant_stl.1} parent=1 // loop_footer_branch
      %13 = sbr.rel target = $region3
    $region8: #{cond_gen_quant_stl.1} parent=1 // loop_exit
      _
    %659 = vsyncpa [#allocation4], 1
    %s660 = scalar_lea.sflag [#allocation4], 1
    %661 = vsyncpa %s660, 1

</llo_original>
